<compile_context>
chip_gen: v6e
topology: v6e:2x2x1
jax: 0.10.0
libtpu: 0.0.40
codegen_flags: <defaults>
</compile_context>

<pallas_src>
import numpy as np
import jax
import jax.numpy as jnp
from jax import lax
from jax.experimental import pallas as pl
from jax.experimental.pallas import tpu as pltpu  # noqa: F401  (TPU backend)

# ---- module config (small, consistent with the module's constructor args) ----
B   = 2      # batch
L   = 16     # source sequence length
D   = 32     # input_size (model_dim)
HID = 64     # hidden_size (hidden_ab_size): keys / query dim
R   = 8      # fixed_seqlen (ab_fixed_length): learned query rows
EPS = 1e-6
NEG = -1e30                      # finite stand-in for masked_fill(-inf)
INV_D_SQRT = 1.0 / float(np.sqrt(HID))


def bridge_kernel(x_ref, xt_ref, wsT_ref, wv_ref, bv_ref, bias_ref, ln_ref,
                  attn_ref, out_ref):
    f32 = jnp.float32

    # values projection: (B*L, D) @ (D, D), lane-aligned result.
    x2 = x_ref[...].reshape(B * L, D)                               # leading merge
    vals = jnp.dot(x2, wv_ref[...], preferred_element_type=f32) + bv_ref[...]

    # scores, already scaled and expanded to torch-view row order:
    #   logits[n, kb*L + l] = q[n//B] . keys[kb, l] / sqrt(HID) + bias
    # bias encodes the key projection bias, the mask (for view batch n//R) and
    # the key-batch block selection (non-selected blocks get -1e30).
    logits = jnp.dot(wsT_ref[...], xt_ref[...],
                     preferred_element_type=f32) + bias_ref[...]    # (B*R, B*L)

    # softmax over all B*L lanes; non-selected / masked entries underflow to 0.
    mx = jnp.max(logits, axis=-1, keepdims=True)
    e = jnp.exp(logits - mx)
    denom = jnp.sum(e, axis=-1, keepdims=True)
    p = e * pl.reciprocal(denom, approx=True)                       # (B*R, B*L)

    # attention weights in view-row order: sum the B key-batch column blocks
    # (all but the selected block are exactly zero).
    attn_view = p[:, 0:L]
    for kb in range(1, B):                                          # static, tiny
        attn_view = attn_view + p[:, kb * L:(kb + 1) * L]           # (B*R, L)

    # single context matmul: block-diagonal A places each view batch's probs at
    # that batch's value rows -> ctx[n] = attn[n] @ values[n // R].
    zero_blk = jnp.zeros((R, L), f32)
    row_blocks = []
    for bp in range(B):                                             # static
        cols = [attn_view[bp * R:(bp + 1) * R, :] if kb == bp else zero_blk
                for kb in range(B)]
        row_blocks.append(jnp.concatenate(cols, axis=1))            # (R, B*L)
    a_bd = jnp.concatenate(row_blocks, axis=0)                      # (B*R, B*L)
    ctx = jnp.dot(a_bd, vals, preferred_element_type=f32)           # (B*R, D)

    # LayerNorm over D (one pass for all B*R rows).
    mu = jnp.mean(ctx, axis=-1, keepdims=True)
    var = jnp.mean((ctx - mu) ** 2, axis=-1, keepdims=True)
    y = (ctx - mu) * lax.rsqrt(var + EPS) * ln_ref[0:1, :] + ln_ref[1:2, :]

    # merged full-block stores (leading-dim-only reshapes).
    attn_ref[...] = attn_view.reshape(B, R, L).astype(attn_ref.dtype)
    out_ref[...] = y.reshape(B, R, D).astype(out_ref.dtype)


def pack_params(params):
    """One-time host packing of the static operands (call once at load time)."""
    q, wk, bk, wv, bv, g, be = params
    ws = (wk @ q.T) * INV_D_SQRT                     # (D, R)  q-folded key proj
    bs = (bk @ q.T) * INV_D_SQRT                     # (1, R)
    # expand to torch-view row order: view row n uses query row n // B
    rep = jnp.arange(B * R) // B                     # (B*R,)
    wsT = ws.T[rep, :]                               # (B*R, D)
    bsT = bs[0, rep][:, None]                        # (B*R, 1)
    ln = jnp.concatenate([g, be], axis=0)            # (2, D)
    return (wsT, bsT, wv, bv, ln)


@jax.jit
def simple_attention_bridge_layer(x, mask, packed):
    """x: (B, L, D) f32; mask: (B, 1, L) f32 with 1.0 = masked (padding) key.
    packed = pack_params(params).  Returns (attention_weights (B,R,L),
    output (B,R,D)) exactly like the module forward."""
    wsT, bsT, wv, bv, ln = packed

    x2 = x.reshape(B * L, D)
    xt = x2.T                                        # (D, B*L): avoids in-kernel transpose

    # Additive bias (B*R, B*L): 0 where (key batch == n % B) and key unmasked
    # (masking uses the VIEW batch n // R, reproducing the torch .view quirk);
    # -1e30 elsewhere.  Also folds in the key-projection bias term bsT.
    # NOTE: assumes mask entries are exactly 0.0 / 1.0.
    n = jnp.arange(B * R)
    sel = (jnp.arange(B)[None, :] == (n[:, None] % B)).astype(jnp.float32)   # (B*R, B)
    maskrow = mask[n // R, 0, :]                                             # (B*R, L)
    keep = sel[:, :, None] * (1.0 - maskrow[:, None, :])                     # (B*R, B, L)
    score_bias = (NEG * (1.0 - keep)).reshape(B * R, B * L) + bsT            # (B*R, B*L)

    # TODO(synk): at B=2 a single ungridded call is fastest; for large batches
    # add a leading "parallel" grid axis so v7x's second TensorCore is used.
    attn, out = pl.pallas_call(
        bridge_kernel,
        out_shape=(jax.ShapeDtypeStruct((B, R, L), jnp.float32),
                   jax.ShapeDtypeStruct((B, R, D), jnp.float32)),
        cost_estimate=pl.CostEstimate(flops=140_000, transcendentals=544,
                                      bytes_accessed=20_480),
    )(x, xt, wsT, wv, bv, score_bias, ln)
    return attn, out


def _reference(x, mask, params):
    """Pure-JAX mirror of the PyTorch forward (including the .view quirk)."""
    q, wk, bk, wv, bv, g, be = params
    keys = x @ wk + bk                                              # (B, L, HID)
    values = x @ wv + bv                                            # (B, L, D)
    raw = (q @ keys.reshape(B * L, HID).T).reshape(B, R, L)         # torch .view
    raw = jnp.where(mask.astype(bool), -jnp.inf, raw)               # masked_fill
    attn = jax.nn.softmax(raw / np.sqrt(HID), axis=-1)
    out = jnp.einsum('brl,bld->brd', attn, values)
    mu = out.mean(axis=-1, keepdims=True)
    var = ((out - mu) ** 2).mean(axis=-1, keepdims=True)
    out = (out - mu) * lax.rsqrt(var + EPS) * g + be
    return attn, out


def _init_params(key):
    # NB: torch initializes query_matrix to zeros; random values are used here
    # so the numerical check is non-trivial (any value is a valid parameter).
    ks = jax.random.split(key, 6)
    f32 = jnp.float32
    q = 0.5 * jax.random.normal(ks[0], (R, HID), f32)
    wk = 0.1 * jax.random.normal(ks[1], (D, HID), f32)
    bk = 0.05 * jax.random.normal(ks[2], (1, HID), f32)
    wv = 0.1 * jax.random.normal(ks[3], (D, D), f32)
    bv = 0.05 * jax.random.normal(ks[4], (1, D), f32)
    g = 1.0 + 0.1 * jax.random.normal(ks[5], (1, D), f32)
    be = jnp.zeros((1, D), f32)
    return (q, wk, bk, wv, bv, g, be)


if __name__ == "__main__":
    key = jax.random.PRNGKey(0)
    kx, kp = jax.random.split(key)
    x = jax.random.normal(kx, (B, L, D), jnp.float32)

    # mask: last 3 keys of batch element 1 are padding (1.0 = masked)
    mask = np.zeros((B, 1, L), np.float32)
    mask[1, 0, -3:] = 1.0
    mask = jnp.asarray(mask)

    params = _init_params(kp)
    packed = pack_params(params)          # one-time static operand packing

    attn, out = simple_attention_bridge_layer(x, mask, packed)
    attn, out = jax.block_until_ready((attn, out))

    ref_attn, ref_out = _reference(x, mask, params)
    # attn tolerance is loosened slightly for pl.reciprocal(approx=True); the
    # LayerNorm output is scale-invariant to the per-row reciprocal error.
    np.testing.assert_allclose(np.asarray(attn), np.asarray(ref_attn),
                               rtol=1e-2, atol=2e-4)
    np.testing.assert_allclose(np.asarray(out), np.asarray(ref_out),
                               rtol=1e-3, atol=1e-3)
    print("KERNEL_OK")
</pallas_src>

<mosaic_0001>
module attributes {stable_mosaic.version = 11 : i64} {
  func.func @bridge_kernel(%arg0: memref<2x16x32xf32, #tpu.memory_space<vmem>>, %arg1: memref<32x32xf32, #tpu.memory_space<vmem>>, %arg2: memref<16x32xf32, #tpu.memory_space<vmem>>, %arg3: memref<32x32xf32, #tpu.memory_space<vmem>>, %arg4: memref<1x32xf32, #tpu.memory_space<vmem>>, %arg5: memref<16x32xf32, #tpu.memory_space<vmem>>, %arg6: memref<2x32xf32, #tpu.memory_space<vmem>>, %arg7: memref<2x8x16xf32, #tpu.memory_space<vmem>>, %arg8: memref<2x8x32xf32, #tpu.memory_space<vmem>>) attributes {dimension_semantics = [], scalar_prefetch = 0 : i64, scratch_operands = 0 : i64, tpu.core_type = #tpu.core_type<tc>} {
    %c0 = arith.constant 0 : index
    %c0_0 = arith.constant 0 : index
    %c0_1 = arith.constant 0 : index
    %0 = vector.load %arg0[%c0, %c0_0, %c0_1] : memref<2x16x32xf32, #tpu.memory_space<vmem>>, vector<2x16x32xf32>
    %1 = vector.shape_cast %0 : vector<2x16x32xf32> to vector<32x32xf32>
    %c0_2 = arith.constant 0 : index
    %c0_3 = arith.constant 0 : index
    %2 = vector.load %arg3[%c0_2, %c0_3] : memref<32x32xf32, #tpu.memory_space<vmem>>, vector<32x32xf32>
    %cst = arith.constant dense<0.000000e+00> : vector<32x32xf32>
    %3 = tpu.matmul %1, %2, %cst {dimension_numbers = #tpu.dot_dimension_numbers<[1], [0], [0], [1], [0, 0, 1, 1], [], []>} : vector<32x32xf32>, vector<32x32xf32>, vector<32x32xf32> -> vector<32x32xf32>
    %c0_4 = arith.constant 0 : index
    %c0_5 = arith.constant 0 : index
    %4 = vector.load %arg4[%c0_4, %c0_5] : memref<1x32xf32, #tpu.memory_space<vmem>>, vector<1x32xf32>
    %5 = vector.broadcast %4 : vector<1x32xf32> to vector<32x32xf32>
    %6 = arith.addf %3, %5 : vector<32x32xf32>
    %c0_6 = arith.constant 0 : index
    %c0_7 = arith.constant 0 : index
    %7 = vector.load %arg2[%c0_6, %c0_7] : memref<16x32xf32, #tpu.memory_space<vmem>>, vector<16x32xf32>
    %c0_8 = arith.constant 0 : index
    %c0_9 = arith.constant 0 : index
    %8 = vector.load %arg1[%c0_8, %c0_9] : memref<32x32xf32, #tpu.memory_space<vmem>>, vector<32x32xf32>
    %cst_10 = arith.constant dense<0.000000e+00> : vector<16x32xf32>
    %9 = tpu.matmul %7, %8, %cst_10 {dimension_numbers = #tpu.dot_dimension_numbers<[1], [0], [0], [1], [0, 0, 1, 1], [], []>} : vector<16x32xf32>, vector<32x32xf32>, vector<16x32xf32> -> vector<16x32xf32>
    %c0_11 = arith.constant 0 : index
    %c0_12 = arith.constant 0 : index
    %10 = vector.load %arg5[%c0_11, %c0_12] : memref<16x32xf32, #tpu.memory_space<vmem>>, vector<16x32xf32>
    %11 = arith.addf %9, %10 : vector<16x32xf32>
    %cst_13 = arith.constant dense<0xFF800000> : vector<16xf32>
    %12 = vector.multi_reduction <maximumf>, %11, %cst_13 [1] : vector<16x32xf32> to vector<16xf32>
    %13 = vector.shape_cast %12 : vector<16xf32> to vector<16x1xf32>
    %14 = vector.broadcast %13 : vector<16x1xf32> to vector<16x32xf32>
    %15 = arith.subf %11, %14 : vector<16x32xf32>
    %16 = math.exp %15 : vector<16x32xf32>
    %cst_14 = arith.constant dense<0.000000e+00> : vector<16xf32>
    %17 = vector.multi_reduction <add>, %16, %cst_14 [1] : vector<16x32xf32> to vector<16xf32>
    %18 = vector.shape_cast %17 : vector<16xf32> to vector<16x1xf32>
    %19 = tpu.reciprocal %18 {approx = true} : vector<16x1xf32> -> vector<16x1xf32>
    %20 = vector.broadcast %19 : vector<16x1xf32> to vector<16x32xf32>
    %21 = arith.mulf %16, %20 : vector<16x32xf32>
    %22 = vector.extract_strided_slice %21 {offsets = [0, 0], sizes = [16, 16], strides = [1, 1]} : vector<16x32xf32> to vector<16x16xf32>
    %23 = vector.extract_strided_slice %21 {offsets = [0, 16], sizes = [16, 16], strides = [1, 1]} : vector<16x32xf32> to vector<16x16xf32>
    %24 = arith.addf %22, %23 : vector<16x16xf32>
    %cst_15 = arith.constant 0.000000e+00 : f32
    %25 = vector.broadcast %cst_15 : f32 to vector<8x16xf32>
    %26 = vector.extract_strided_slice %24 {offsets = [0, 0], sizes = [8, 16], strides = [1, 1]} : vector<16x16xf32> to vector<8x16xf32>
    %27 = tpu.concatenate %26, %25 in 1 : vector<8x16xf32>, vector<8x16xf32> -> vector<8x32xf32>
    %28 = vector.extract_strided_slice %24 {offsets = [8, 0], sizes = [8, 16], strides = [1, 1]} : vector<16x16xf32> to vector<8x16xf32>
    %29 = tpu.concatenate %25, %28 in 1 : vector<8x16xf32>, vector<8x16xf32> -> vector<8x32xf32>
    %30 = tpu.concatenate %27, %29 in 0 : vector<8x32xf32>, vector<8x32xf32> -> vector<16x32xf32>
    %cst_16 = arith.constant dense<0.000000e+00> : vector<16x32xf32>
    %31 = tpu.matmul %30, %6, %cst_16 {dimension_numbers = #tpu.dot_dimension_numbers<[1], [0], [0], [1], [0, 0, 1, 1], [], []>} : vector<16x32xf32>, vector<32x32xf32>, vector<16x32xf32> -> vector<16x32xf32>
    %cst_17 = arith.constant dense<0.000000e+00> : vector<16xf32>
    %32 = vector.multi_reduction <add>, %31, %cst_17 [1] : vector<16x32xf32> to vector<16xf32>
    %33 = vector.shape_cast %32 : vector<16xf32> to vector<16x1xf32>
    %cst_18 = arith.constant 3.200000e+01 : f32
    %34 = vector.broadcast %cst_18 : f32 to vector<16x1xf32>
    %35 = arith.divf %33, %34 : vector<16x1xf32>
    %36 = vector.broadcast %35 : vector<16x1xf32> to vector<16x32xf32>
    %37 = arith.subf %31, %36 : vector<16x32xf32>
    %38 = arith.mulf %37, %37 : vector<16x32xf32>
    %cst_19 = arith.constant dense<0.000000e+00> : vector<16xf32>
    %39 = vector.multi_reduction <add>, %38, %cst_19 [1] : vector<16x32xf32> to vector<16xf32>
    %40 = vector.shape_cast %39 : vector<16xf32> to vector<16x1xf32>
    %cst_20 = arith.constant 3.200000e+01 : f32
    %41 = vector.broadcast %cst_20 : f32 to vector<16x1xf32>
    %42 = arith.divf %40, %41 : vector<16x1xf32>
    %43 = vector.broadcast %35 : vector<16x1xf32> to vector<16x32xf32>
    %44 = arith.subf %31, %43 : vector<16x32xf32>
    %cst_21 = arith.constant 9.99999997E-7 : f32
    %45 = vector.broadcast %cst_21 : f32 to vector<16x1xf32>
    %46 = arith.addf %42, %45 : vector<16x1xf32>
    %47 = math.rsqrt %46 : vector<16x1xf32>
    %48 = vector.broadcast %47 : vector<16x1xf32> to vector<16x32xf32>
    %49 = arith.mulf %44, %48 : vector<16x32xf32>
    %c0_22 = arith.constant 0 : index
    %c0_23 = arith.constant 0 : index
    %50 = vector.load %arg6[%c0_22, %c0_23] : memref<2x32xf32, #tpu.memory_space<vmem>>, vector<1x32xf32>
    %51 = vector.broadcast %50 : vector<1x32xf32> to vector<16x32xf32>
    %52 = arith.mulf %49, %51 : vector<16x32xf32>
    %c1 = arith.constant 1 : index
    %c0_24 = arith.constant 0 : index
    %53 = vector.load %arg6[%c1, %c0_24] : memref<2x32xf32, #tpu.memory_space<vmem>>, vector<1x32xf32>
    %54 = vector.broadcast %53 : vector<1x32xf32> to vector<16x32xf32>
    %55 = arith.addf %52, %54 : vector<16x32xf32>
    %56 = vector.shape_cast %24 : vector<16x16xf32> to vector<2x8x16xf32>
    %c0_25 = arith.constant 0 : index
    %c0_26 = arith.constant 0 : index
    %c0_27 = arith.constant 0 : index
    %57 = vector.load %arg7[%c0_25, %c0_26, %c0_27] : memref<2x8x16xf32, #tpu.memory_space<vmem>>, vector<2x8x16xf32>
    tpu.vector_store %arg7[%c0_25, %c0_26, %c0_27], %56 {strides = array<i32>} : memref<2x8x16xf32, #tpu.memory_space<vmem>>, vector<2x8x16xf32>,
    %58 = vector.shape_cast %55 : vector<16x32xf32> to vector<2x8x32xf32>
    %c0_28 = arith.constant 0 : index
    %c0_29 = arith.constant 0 : index
    %c0_30 = arith.constant 0 : index
    %59 = vector.load %arg8[%c0_28, %c0_29, %c0_30] : memref<2x8x32xf32, #tpu.memory_space<vmem>>, vector<2x8x32xf32>
    tpu.vector_store %arg8[%c0_28, %c0_29, %c0_30], %58 {strides = array<i32>} : memref<2x8x32xf32, #tpu.memory_space<vmem>>, vector<2x8x32xf32>,
    return
  }
}

</mosaic_0001>

<llo_original>
// kernel: simple_attention_bridge_layer.1
$region0: #{simple_attention_bridge_layer.1}
  #allocation0 [shape = 'u32[]', space=smem, size = 0x4, offset = 0x4, fixed_abs, tag = 'smem constant byte address 0x4 - core index']
  #allocation1 [shape = 'u32[144,128]{1,0:T(1,128)}', space=vmem, size = 0x12000, scoped, tag = 'internal scratch']
  %s0 = inlined_call_operand.vmem [shape: f32[2,16,32], index: 0, kind: input, shape index: {}]
  %s1 = inlined_call_operand.vmem [shape: f32[32,32], index: 1, kind: input, shape index: {}]
  %s2 = inlined_call_operand.vmem [shape: f32[16,32], index: 2, kind: input, shape index: {}]
  %s3 = inlined_call_operand.vmem [shape: f32[32,32], index: 3, kind: input, shape index: {}]
  %s4 = inlined_call_operand.vmem [shape: f32[1,32], index: 4, kind: input, shape index: {}]
  %s5 = inlined_call_operand.vmem [shape: f32[16,32], index: 5, kind: input, shape index: {}]
  %s6 = inlined_call_operand.vmem [shape: f32[2,32], index: 6, kind: input, shape index: {}]
  %s7 = inlined_call_operand.hbm [shape: f32[2,8,16], index: 7, kind: output, shape index: {0}]
  %s8 = inlined_call_operand.hbm [shape: f32[2,8,32], index: 8, kind: output, shape index: {1}]
  %9 = xla_tuple %s7, %s8
  %s10 = sld [smem:[#allocation0]]
  $region46: #{simple_attention_bridge_layer.1} parent=0
    _
  %s12 = ssub.s32 1, %s10
  %s13 = scalar_select 0, %s12, %s10
  $region1: #{simple_attention_bridge_layer.1} parent=0
    #allocation2 [shape = 'u8[8192]{0}', space=vmem, size = 0x2000, scoped, tag = 'output window, operand 0, single buffered']
    #allocation3 [shape = 's32[1]{0}', space=sflag, size = 0x4, scoped, tag = 'scoped memory for simple_attention_bridge_layer.1']
    #allocation4 [shape = 'u8[8192]{0}', space=vmem, size = 0x2000, scoped, tag = 'output window, operand 1, single buffered']
    #allocation5 [shape = 's32[1]{0}', space=sflag, size = 0x4, scoped, tag = 'scoped memory for simple_attention_bridge_layer.1']
    %14 = vsyncpa [#allocation3], 0
    %15 = vsyncpa [#allocation5], 0
    // Predicated region
    $region2: #{simple_attention_bridge_layer.1} parent=1 // pred_check
      _
    $region3: #{simple_attention_bridge_layer.1} parent=1 // pred_check_branch
      %17 = sbr.rel (0) target = $region5
    $region4: #{simple_attention_bridge_layer.1} parent=1 // pred_region
      _
    $region5: #{simple_attention_bridge_layer.1} parent=1 // pred_fallthru
      _
    // Predicated region
    $region6: #{simple_attention_bridge_layer.1} parent=1 // pred_check
      _
    $region7: #{simple_attention_bridge_layer.1} parent=1 // pred_check_branch
      %19 = sbr.rel (0) target = $region9
    $region8: #{simple_attention_bridge_layer.1} parent=1 // pred_region
      _
    $region9: #{simple_attention_bridge_layer.1} parent=1 // pred_fallthru
      _
    // Predicated region
    $region10: #{simple_attention_bridge_layer.1} parent=1 // pred_check
      _
    $region11: #{simple_attention_bridge_layer.1} parent=1 // pred_check_branch
      %21 = sbr.rel (0) target = $region13
    $region12: #{simple_attention_bridge_layer.1} parent=1 // pred_region
      _
    $region13: #{simple_attention_bridge_layer.1} parent=1 // pred_fallthru
      _
    // Predicated region
    $region14: #{simple_attention_bridge_layer.1} parent=1 // pred_check
      _
    $region15: #{simple_attention_bridge_layer.1} parent=1 // pred_check_branch
      %23 = sbr.rel (0) target = $region17
    $region16: #{simple_attention_bridge_layer.1} parent=1 // pred_region
      _
    $region17: #{simple_attention_bridge_layer.1} parent=1 // pred_fallthru
      _
    // Predicated region
    $region18: #{simple_attention_bridge_layer.1} parent=1 // pred_check
      _
    $region19: #{simple_attention_bridge_layer.1} parent=1 // pred_check_branch
      %25 = sbr.rel (0) target = $region21
    $region20: #{simple_attention_bridge_layer.1} parent=1 // pred_region
      _
    $region21: #{simple_attention_bridge_layer.1} parent=1 // pred_fallthru
      _
    // Predicated region
    $region22: #{simple_attention_bridge_layer.1} parent=1 // pred_check
      _
    $region23: #{simple_attention_bridge_layer.1} parent=1 // pred_check_branch
      %27 = sbr.rel (0) target = $region25
    $region24: #{simple_attention_bridge_layer.1} parent=1 // pred_region
      _
    $region25: #{simple_attention_bridge_layer.1} parent=1 // pred_fallthru
      _
    // Predicated region
    $region26: #{simple_attention_bridge_layer.1} parent=1 // pred_check
      _
    $region27: #{simple_attention_bridge_layer.1} parent=1 // pred_check_branch
      %29 = sbr.rel (0) target = $region29
    $region28: #{simple_attention_bridge_layer.1} parent=1 // pred_region
      _
    $region29: #{simple_attention_bridge_layer.1} parent=1 // pred_fallthru
      _
    %v30 = vld [vmem:[%s0] sm:$0xff]
    %v31 = vld [vmem:[%s0 + $0x8] sm:$0xff]
    %v32 = vld [vmem:[%s0 + $0x10] sm:$0xff]
    %v33 = vld [vmem:[%s0 + $0x18] sm:$0xff]
    %v34 = vld [vmem:[%s3] sm:$0xff]
    %v35 = vld [vmem:[%s3 + $0x8] sm:$0xff]
    %v36 = vld [vmem:[%s3 + $0x10] sm:$0xff]
    %v37 = vld [vmem:[%s3 + $0x18] sm:$0xff]
    %v38 = vld [vmem:[%s4] sm:$0x1]
    %v40 = vlaneseq
    %v41 = vshrl.u32 %v40, 7
    %v42 = vsub.s32 0, %v41
    %v43 = vrot.slane %v38, %v42
    %vm45 = vcmask 261120
    %v47 = vsel %vm45, %v30, 0
    %v50 = vsel %vm45, %v31, 0
    %v53 = vsel %vm45, %v32, 0
    %v56 = vsel %vm45, %v33, 0
    %58 = vmatprep.subr.mxu0 0.0
    %59 = vmatpush1.msra.mxu0 0.0
    %60 = vmatprep.subr.mxu0 0.0
    %61 = vmatpush1.msra.mxu0 0.0
    %62 = vmatprep.subr.mxu0 0.0
    %63 = vmatpush1.msra.mxu0 0.0
    %64 = vmatprep.subr.mxu0 0.0
    %65 = vmatpush1.msra.mxu0 0.0
    %66 = vmatprep.subr.mxu0 0.0
    %67 = vmatpush1.msra.mxu0 0.0
    %68 = vmatprep.subr.mxu0 0.0
    %69 = vmatpush1.msra.mxu0 0.0
    %70 = vmatprep.subr.mxu0 0.0
    %71 = vmatpush1.msra.mxu0 0.0
    %72 = vmatprep.subr.mxu0 0.0
    %73 = vmatpush1.msra.mxu0 0.0
    %74 = vmatprep.subr.mxu0 0.0
    %75 = vmatpush1.msra.mxu0 0.0
    %76 = vmatprep.subr.mxu0 0.0
    %77 = vmatpush1.msra.mxu0 0.0
    %78 = vmatprep.subr.mxu0 0.0
    %79 = vmatpush1.msra.mxu0 0.0
    %80 = vmatprep.subr.mxu0 0.0
    %81 = vmatpush1.msra.mxu0 0.0
    %82 = vmatprep.subr.mxu0 0.0
    %83 = vmatpush1.msra.mxu0 %v37
    %84 = vmatprep.subr.mxu0 0.0
    %85 = vmatpush1.msra.mxu0 %v36
    %86 = vmatprep.subr.mxu0 0.0
    %87 = vmatpush1.msra.mxu0 %v35
    %88 = vmatprep.subr.mxu0 0.0
    %89 = vmatpush1.msra.mxu0 %v34
    %90 = vmatprep.subr.mxu0 0.0
    %91 = vmatpush2.msra.mxu0 0.0
    %92 = vmatprep.subr.mxu0 0.0
    %93 = vmatpush2.msra.mxu0 0.0
    %94 = vmatprep.subr.mxu0 0.0
    %95 = vmatpush2.msra.mxu0 0.0
    %96 = vmatprep.subr.mxu0 0.0
    %97 = vmatpush2.msra.mxu0 0.0
    %98 = vmatprep.subr.mxu0 0.0
    %99 = vmatpush2.msra.mxu0 0.0
    %100 = vmatprep.subr.mxu0 0.0
    %101 = vmatpush2.msra.mxu0 0.0
    %102 = vmatprep.subr.mxu0 0.0
    %103 = vmatpush2.msra.mxu0 0.0
    %104 = vmatprep.subr.mxu0 0.0
    %105 = vmatpush2.msra.mxu0 0.0
    %106 = vmatprep.subr.mxu0 0.0
    %107 = vmatpush2.msra.mxu0 0.0
    %108 = vmatprep.subr.mxu0 0.0
    %109 = vmatpush2.msra.mxu0 0.0
    %110 = vmatprep.subr.mxu0 0.0
    %111 = vmatpush2.msra.mxu0 0.0
    %112 = vmatprep.subr.mxu0 0.0
    %113 = vmatpush2.msra.mxu0 0.0
    %114 = vmatprep.subr.mxu0 0.0
    %115 = vmatpush2.msra.mxu0 0.0
    %116 = vmatprep.subr.mxu0 0.0
    %117 = vmatpush2.msra.mxu0 0.0
    %118 = vmatprep.subr.mxu0 0.0
    %119 = vmatpush2.msra.mxu0 0.0
    %120 = vmatprep.subr.mxu0 0.0
    %121 = vmatpush2.msra.mxu0 0.0
    %122 = vmatprep.mubr.f32.mxu0 0.0
    %123 = vmatmul.mubr.f32.gmra.mxu0 %v47
    %v124 = vpop.f32.mrf.mxu0
    %v125 = vadd.f32 %v43, %v124
    %v126 = vpop.f32.mrf.mxu0
    %127 = vmatprep.mubr.f32.mxu0 0.0
    %128 = vmatmul.mubr.f32.gmra.mxu0 %v50
    %v129 = vpop.f32.mrf.mxu0
    %v130 = vadd.f32 %v43, %v129
    %v131 = vpop.f32.mrf.mxu0
    %132 = vmatprep.mubr.f32.mxu0 0.0
    %133 = vmatmul.mubr.f32.gmra.mxu0 %v53
    %v134 = vpop.f32.mrf.mxu0
    %v135 = vadd.f32 %v43, %v134
    %v136 = vpop.f32.mrf.mxu0
    %137 = vmatprep.mubr.f32.mxu0 0.0
    %138 = vmatmul.mubr.f32.gmra.mxu0 %v56
    %v139 = vpop.f32.mrf.mxu0
    %v140 = vadd.f32 %v43, %v139
    %v141 = vpop.f32.mrf.mxu0
    %142 = vdwg.mxu0
    %v143 = vld [vmem:[%s2] sm:$0xff]
    %v144 = vld [vmem:[%s2 + $0x8] sm:$0xff]
    %v145 = vld [vmem:[%s1] sm:$0xff]
    %v146 = vld [vmem:[%s1 + $0x8] sm:$0xff]
    %v147 = vld [vmem:[%s1 + $0x10] sm:$0xff]
    %v148 = vld [vmem:[%s1 + $0x18] sm:$0xff]
    %v149 = vld [vmem:[%s5] sm:$0xff]
    %v150 = vld [vmem:[%s5 + $0x8] sm:$0xff]
    %v152 = vsel %vm45, %v143, 0
    %v155 = vsel %vm45, %v144, 0
    %157 = vmatprep.subr.mxu0 0.0
    %158 = vmatpush1.msra.mxu0 0.0
    %159 = vmatprep.subr.mxu0 0.0
    %160 = vmatpush1.msra.mxu0 0.0
    %161 = vmatprep.subr.mxu0 0.0
    %162 = vmatpush1.msra.mxu0 0.0
    %163 = vmatprep.subr.mxu0 0.0
    %164 = vmatpush1.msra.mxu0 0.0
    %165 = vmatprep.subr.mxu0 0.0
    %166 = vmatpush1.msra.mxu0 0.0
    %167 = vmatprep.subr.mxu0 0.0
    %168 = vmatpush1.msra.mxu0 0.0
    %169 = vmatprep.subr.mxu0 0.0
    %170 = vmatpush1.msra.mxu0 0.0
    %171 = vmatprep.subr.mxu0 0.0
    %172 = vmatpush1.msra.mxu0 0.0
    %173 = vmatprep.subr.mxu0 0.0
    %174 = vmatpush1.msra.mxu0 0.0
    %175 = vmatprep.subr.mxu0 0.0
    %176 = vmatpush1.msra.mxu0 0.0
    %177 = vmatprep.subr.mxu0 0.0
    %178 = vmatpush1.msra.mxu0 0.0
    %179 = vmatprep.subr.mxu0 0.0
    %180 = vmatpush1.msra.mxu0 0.0
    %181 = vmatprep.subr.mxu0 0.0
    %182 = vmatpush1.msra.mxu0 %v148
    %183 = vmatprep.subr.mxu0 0.0
    %184 = vmatpush1.msra.mxu0 %v147
    %185 = vmatprep.subr.mxu0 0.0
    %186 = vmatpush1.msra.mxu0 %v146
    %187 = vmatprep.subr.mxu0 0.0
    %188 = vmatpush1.msra.mxu0 %v145
    %189 = vmatprep.subr.mxu0 0.0
    %190 = vmatpush2.msra.mxu0 0.0
    %191 = vmatprep.subr.mxu0 0.0
    %192 = vmatpush2.msra.mxu0 0.0
    %193 = vmatprep.subr.mxu0 0.0
    %194 = vmatpush2.msra.mxu0 0.0
    %195 = vmatprep.subr.mxu0 0.0
    %196 = vmatpush2.msra.mxu0 0.0
    %197 = vmatprep.subr.mxu0 0.0
    %198 = vmatpush2.msra.mxu0 0.0
    %199 = vmatprep.subr.mxu0 0.0
    %200 = vmatpush2.msra.mxu0 0.0
    %201 = vmatprep.subr.mxu0 0.0
    %202 = vmatpush2.msra.mxu0 0.0
    %203 = vmatprep.subr.mxu0 0.0
    %204 = vmatpush2.msra.mxu0 0.0
    %205 = vmatprep.subr.mxu0 0.0
    %206 = vmatpush2.msra.mxu0 0.0
    %207 = vmatprep.subr.mxu0 0.0
    %208 = vmatpush2.msra.mxu0 0.0
    %209 = vmatprep.subr.mxu0 0.0
    %210 = vmatpush2.msra.mxu0 0.0
    %211 = vmatprep.subr.mxu0 0.0
    %212 = vmatpush2.msra.mxu0 0.0
    %213 = vmatprep.subr.mxu0 0.0
    %214 = vmatpush2.msra.mxu0 0.0
    %215 = vmatprep.subr.mxu0 0.0
    %216 = vmatpush2.msra.mxu0 0.0
    %217 = vmatprep.subr.mxu0 0.0
    %218 = vmatpush2.msra.mxu0 0.0
    %219 = vmatprep.subr.mxu0 0.0
    %220 = vmatpush2.msra.mxu0 0.0
    %221 = vmatprep.mubr.f32.mxu0 0.0
    %222 = vmatmul.mubr.f32.gmra.mxu0 %v152
    %v223 = vpop.f32.mrf.mxu0
    %v224 = vadd.f32 %v149, %v223
    %v225 = vpop.f32.mrf.mxu0
    %226 = vmatprep.mubr.f32.mxu0 0.0
    %227 = vmatmul.mubr.f32.gmra.mxu0 %v155
    %v228 = vpop.f32.mrf.mxu0
    %v229 = vadd.f32 %v150, %v228
    %v230 = vpop.f32.mrf.mxu0
    %231 = vdwg.mxu0
    %v232 = vsel %vm45, %v224, -inf
    %233 = vmax.xlane.f32.xlu0 %v232
    %v234 = vpop.xlane.xlu0 %233
    %v235 = vsel %vm45, %v229, -inf
    %236 = vmax.xlane.f32.xlu0 %v235
    %v237 = vpop.xlane.xlu0 %236
    %v238 = vsub.f32 %v224, %v234
    %v239 = vsub.f32 %v229, %v237
    %v240 = vmul.f32 %v238, 1.442695
    %v241 = vpow.pop %v240
    %v242 = vmul.f32 %v239, 1.442695
    %v243 = vpow.pop %v242
    %v244 = vsel %vm45, %v241, 0.0
    %245 = vadd.xlane.f32.xlu0 %v244
    %v246 = vpop.xlane.xlu0 %245
    %v247 = vsel %vm45, %v243, 0.0
    %248 = vadd.xlane.f32.xlu0 %v247
    %v249 = vpop.xlane.xlu0 %248
    %v250 = vrcp.pop %v246
    %v251 = vrcp.pop %v249
    %v252 = vmul.f32 %v241, %v250
    %v253 = vmul.f32 %v243, %v251
    %256 = vrot.lane.b32.xlu0 %v252, 112
    %v257 = vpop.permute.xlu0 %256
    %258 = vrot.lane.b32.xlu0 %v253, 112
    %v259 = vpop.permute.xlu0 %258
    %v262 = vadd.f32 %v252, %v257
    %v263 = vadd.f32 %v253, %v259
    %vm264 = vcmask 130048
    %v265 = vsel %vm264, %v262, 0.0
    %267 = vrot.lane.b32.xlu0 %v263, 16
    %v268 = vpop.permute.xlu0 %267
    %v270 = vsel %vm264, 0.0, %v268
    %v272 = vsel %vm45, %v265, 0
    %v275 = vsel %vm45, %v270, 0
    %277 = vmatprep.subr.mxu0 0.0
    %278 = vmatpush1.msra.mxu0 0.0
    %279 = vmatprep.subr.mxu0 0.0
    %280 = vmatpush1.msra.mxu0 0.0
    %281 = vmatprep.subr.mxu0 0.0
    %282 = vmatpush1.msra.mxu0 0.0
    %283 = vmatprep.subr.mxu0 0.0
    %284 = vmatpush1.msra.mxu0 0.0
    %285 = vmatprep.subr.mxu0 0.0
    %286 = vmatpush1.msra.mxu0 0.0
    %287 = vmatprep.subr.mxu0 0.0
    %288 = vmatpush1.msra.mxu0 0.0
    %289 = vmatprep.subr.mxu0 0.0
    %290 = vmatpush1.msra.mxu0 0.0
    %291 = vmatprep.subr.mxu0 0.0
    %292 = vmatpush1.msra.mxu0 0.0
    %293 = vmatprep.subr.mxu0 0.0
    %294 = vmatpush1.msra.mxu0 0.0
    %295 = vmatprep.subr.mxu0 0.0
    %296 = vmatpush1.msra.mxu0 0.0
    %297 = vmatprep.subr.mxu0 0.0
    %298 = vmatpush1.msra.mxu0 0.0
    %299 = vmatprep.subr.mxu0 0.0
    %300 = vmatpush1.msra.mxu0 0.0
    %301 = vmatprep.subr.mxu0 0.0
    %302 = vmatpush1.msra.mxu0 %v140
    %303 = vmatprep.subr.mxu0 0.0
    %304 = vmatpush1.msra.mxu0 %v135
    %305 = vmatprep.subr.mxu0 0.0
    %306 = vmatpush1.msra.mxu0 %v130
    %307 = vmatprep.subr.mxu0 0.0
    %308 = vmatpush1.msra.mxu0 %v125
    %309 = vmatprep.subr.mxu0 0.0
    %310 = vmatpush2.msra.mxu0 0.0
    %311 = vmatprep.subr.mxu0 0.0
    %312 = vmatpush2.msra.mxu0 0.0
    %313 = vmatprep.subr.mxu0 0.0
    %314 = vmatpush2.msra.mxu0 0.0
    %315 = vmatprep.subr.mxu0 0.0
    %316 = vmatpush2.msra.mxu0 0.0
    %317 = vmatprep.subr.mxu0 0.0
    %318 = vmatpush2.msra.mxu0 0.0
    %319 = vmatprep.subr.mxu0 0.0
    %320 = vmatpush2.msra.mxu0 0.0
    %321 = vmatprep.subr.mxu0 0.0
    %322 = vmatpush2.msra.mxu0 0.0
    %323 = vmatprep.subr.mxu0 0.0
    %324 = vmatpush2.msra.mxu0 0.0
    %325 = vmatprep.subr.mxu0 0.0
    %326 = vmatpush2.msra.mxu0 0.0
    %327 = vmatprep.subr.mxu0 0.0
    %328 = vmatpush2.msra.mxu0 0.0
    %329 = vmatprep.subr.mxu0 0.0
    %330 = vmatpush2.msra.mxu0 0.0
    %331 = vmatprep.subr.mxu0 0.0
    %332 = vmatpush2.msra.mxu0 0.0
    %333 = vmatprep.subr.mxu0 0.0
    %334 = vmatpush2.msra.mxu0 0.0
    %335 = vmatprep.subr.mxu0 0.0
    %336 = vmatpush2.msra.mxu0 0.0
    %337 = vmatprep.subr.mxu0 0.0
    %338 = vmatpush2.msra.mxu0 0.0
    %339 = vmatprep.subr.mxu0 0.0
    %340 = vmatpush2.msra.mxu0 0.0
    %341 = vmatprep.mubr.f32.mxu0 0.0
    %342 = vmatmul.mubr.f32.gmra.mxu0 %v272
    %v343 = vpop.f32.mrf.mxu0
    %v344 = vadd.f32 0.0, %v343
    %v345 = vpop.f32.mrf.mxu0
    %346 = vmatprep.mubr.f32.mxu0 0.0
    %347 = vmatmul.mubr.f32.gmra.mxu0 %v275
    %v348 = vpop.f32.mrf.mxu0
    %v349 = vadd.f32 0.0, %v348
    %v350 = vpop.f32.mrf.mxu0
    %351 = vdwg.mxu0
    %v352 = vsel %vm45, %v344, 0.0
    %353 = vadd.xlane.f32.xlu0 %v352
    %v354 = vpop.xlane.xlu0 %353
    %v355 = vsel %vm45, %v349, 0.0
    %356 = vadd.xlane.f32.xlu0 %v355
    %v357 = vpop.xlane.xlu0 %356
    %v358 = vrcp.pop 32.0
    %v359 = vmul.f32 %v354, %v358
    %v360 = vmul.f32 %v357, %v358
    %v361 = vsub.f32 %v344, %v359
    %v362 = vsub.f32 %v349, %v360
    %v363 = vmul.f32 %v361, %v361
    %v364 = vmul.f32 %v362, %v362
    %v365 = vsel %vm45, %v363, 0.0
    %366 = vadd.xlane.f32.xlu0 %v365
    %v367 = vpop.xlane.xlu0 %366
    %v368 = vsel %vm45, %v364, 0.0
    %369 = vadd.xlane.f32.xlu0 %v368
    %v370 = vpop.xlane.xlu0 %369
    %v371 = vmul.f32 %v367, %v358
    %v372 = vmul.f32 %v370, %v358
    %v373 = vadd.f32 %v371, 1e-06
    %v374 = vadd.f32 %v372, 1e-06
    %v375 = vrsqrt.pop %v373
    %v376 = vrsqrt.pop %v374
    %v377 = vmul.f32 %v361, %v375
    %v378 = vmul.f32 %v362, %v376
    %v379 = vld [vmem:[%s6] sm:$0x1]
    %v380 = vlaneseq
    %v381 = vshrl.u32 %v380, 7
    %v382 = vsub.s32 0, %v381
    %v383 = vrot.slane %v379, %v382
    %v384 = vmul.f32 %v377, %v383
    %v385 = vmul.f32 %v378, %v383
    %v386 = vld [vmem:[%s6 + $0x1] sm:$0x1]
    %v387 = vlaneseq
    %v388 = vshrl.u32 %v387, 7
    %v389 = vsub.s32 0, %v388
    %v390 = vrot.slane %v386, %v389
    %v391 = vadd.f32 %v384, %v390
    %v392 = vadd.f32 %v385, %v390
    %393 = vst.msk [vmem:[#allocation2] sm:$0xff] %vm264, %v262
    %394 = vst.msk [vmem:[#allocation2 + $0x8] sm:$0xff] %vm264, %v263
    %395 = vst.msk [vmem:[#allocation4] sm:$0xff] %vm45, %v391
    %396 = vst.msk [vmem:[#allocation4 + $0x8] sm:$0xff] %vm45, %v392
    // Predicated region
    $region30: #{simple_attention_bridge_layer.1} parent=1 // pred_check
      _
    $region31: #{simple_attention_bridge_layer.1} parent=1 // pred_check_branch
      %398 = sbr.rel (0) target = $region33
    $region32: #{simple_attention_bridge_layer.1} parent=1 // pred_region
      %s400 = ssub.s32 256, 256
      %401 = vsyncadd [#allocation3], %s400
      %s402 = sshll.u32 [#allocation2], 4
      %s403 = int_to_ptr.vmem [resolvable:$true] %s402
      %408 = dma.vmem_to_hbm [thread:$0]  %s403, 256, %s7, [#allocation3], 128, 128, 8
    $region33: #{simple_attention_bridge_layer.1} parent=1 // pred_fallthru
      _
    // Predicated region
    $region34: #{simple_attention_bridge_layer.1} parent=1 // pred_check
      _
    $region35: #{simple_attention_bridge_layer.1} parent=1 // pred_check_branch
      %410 = sbr.rel (0) target = $region37
    $region36: #{simple_attention_bridge_layer.1} parent=1 // pred_region
      %s412 = ssub.s32 256, 256
      %413 = vsyncadd [#allocation5], %s412
      %s414 = sshll.u32 [#allocation4], 4
      %s415 = int_to_ptr.vmem [resolvable:$true] %s414
      %420 = dma.vmem_to_hbm [thread:$0]  %s415, 256, %s8, [#allocation5], 128, 128, 8
    $region37: #{simple_attention_bridge_layer.1} parent=1 // pred_fallthru
      _
    // Predicated region
    $region38: #{simple_attention_bridge_layer.1} parent=1 // pred_check
      _
    $region39: #{simple_attention_bridge_layer.1} parent=1 // pred_check_branch
      %422 = sbr.rel (0) target = $region41
    $region40: #{simple_attention_bridge_layer.1} parent=1 // pred_region
      %423 = dma.done [#allocation3], 256
    $region41: #{simple_attention_bridge_layer.1} parent=1 // pred_fallthru
      _
    // Predicated region
    $region42: #{simple_attention_bridge_layer.1} parent=1 // pred_check
      _
    $region43: #{simple_attention_bridge_layer.1} parent=1 // pred_check_branch
      %425 = sbr.rel (0) target = $region45
    $region44: #{simple_attention_bridge_layer.1} parent=1 // pred_region
      %426 = dma.done [#allocation5], 256
    $region45: #{simple_attention_bridge_layer.1} parent=1 // pred_fallthru
      _
    %427 = vsyncpa [#allocation3], 1
    %428 = vsyncpa [#allocation5], 1

</llo_original>
